<compile_context>
chip_gen: v7x
topology: tpu7x:2x2x1
jax: 0.10.0
libtpu: 0.0.40
codegen_flags: <defaults>
</compile_context>

<pallas_src>
import functools

import jax
import jax.numpy as jnp
from jax.experimental import pallas as pl
from jax.experimental.pallas import tpu as pltpu


def _mlp_kernel(x_ref, w13_ref, w2_ref, o_ref, acc_ref, *, tn):
    # x_ref:   (tm, dim)      bf16
    # w13_ref: (dim, 2*tn)    bf16   [w1^T tile | w3^T tile]
    # w2_ref:  (tn, dim)      bf16   (w2^T tile)
    # o_ref:   (tm, dim)      bf16
    # acc_ref: (tm, dim)      f32 scratch accumulator
    k = pl.program_id(1)

    @pl.when(k == 0)
    def _():
        acc_ref[...] = jnp.zeros_like(acc_ref)

    x = x_ref[...]
    # fused up-projection: one MXU matmul producing [h1 | h3], f32 accumulation
    h = jnp.dot(x, w13_ref[...], preferred_element_type=jnp.float32)  # (tm, 2*tn)
    h1 = h[:, :tn]
    h3 = h[:, tn:]

    # SiLU gate, cast to bf16 before the down projection (matches bf16 pipeline)
    g = ((h1 * jax.nn.sigmoid(h1)) * h3).astype(jnp.bfloat16)

    # partial down projection for this inter_dim slab, accumulate in f32
    acc_ref[...] += jnp.dot(g, w2_ref[...], preferred_element_type=jnp.float32)

    @pl.when(k == pl.num_programs(1) - 1)
    def _():
        o_ref[...] = acc_ref[...].astype(o_ref.dtype)


def prepare_mlp_weights(w1, w2, w3, *, tn):
    """One-time weight prep (do this at load time, NOT per forward call).

    Returns:
      w13t: (dim, 2*inter_dim) bf16, per-tile interleaved so that block k of
            width 2*tn is [w1^T[:, k*tn:(k+1)*tn] | w3^T[:, k*tn:(k+1)*tn]].
      w2t:  (inter_dim, dim)   bf16.
    """
    inter_dim, dim = w1.shape
    assert inter_dim % tn == 0, "tn must divide inter_dim"
    nk = inter_dim // tn
    w1t = jnp.transpose(w1).reshape(dim, nk, tn)
    w3t = jnp.transpose(w3).reshape(dim, nk, tn)
    w13t = jnp.concatenate([w1t, w3t], axis=2).reshape(dim, 2 * inter_dim)
    w2t = jnp.transpose(w2)  # (inter_dim, dim)
    return w13t, w2t


def mlp_forward(x, w13t, w2t, *, tm=256, tn=512):
    """x: (..., dim) bf16.  w13t/w2t from prepare_mlp_weights (same tn)."""
    orig_shape = x.shape
    dim = w13t.shape[0]
    inter_dim = w2t.shape[0]
    assert w13t.shape[1] == 2 * inter_dim
    assert inter_dim % tn == 0

    x2d = x.reshape(-1, dim)
    M = x2d.shape[0]

    # bound the token tile: multiple of 16 (bf16 sublane packing), never larger
    # than the (rounded-up) token count.
    tm = min(tm, max(16, ((M + 15) // 16) * 16))
    tm = max(16, (tm // 16) * 16)

    m_tiles = pl.cdiv(M, tm)
    k_tiles = inter_dim // tn
    grid = (m_tiles, k_tiles)

    # derive a VMEM budget from the actual tiles (double-buffered IO + f32 acc)
    in_bytes = 2 * (tm * dim * 2 + dim * 2 * tn * 2 + tn * dim * 2 + tm * dim * 2)
    vmem_limit = min(max(in_bytes + tm * dim * 4 + (4 << 20), 32 << 20), 100 << 20)

    cost = pl.CostEstimate(
        flops=6 * M * dim * inter_dim,
        transcendentals=M * inter_dim,
        bytes_accessed=2 * 2 * M * dim
        + 2 * m_tiles * (2 * dim * inter_dim + inter_dim * dim),
    )

    kernel = functools.partial(_mlp_kernel, tn=tn)
    out = pl.pallas_call(
        kernel,
        out_shape=jax.ShapeDtypeStruct((M, dim), x.dtype),
        grid_spec=pltpu.PrefetchScalarGridSpec(
            num_scalar_prefetch=0,
            grid=grid,
            in_specs=[
                pl.BlockSpec((tm, dim), lambda i, k: (i, 0)),       # x tile
                pl.BlockSpec((dim, 2 * tn), lambda i, k: (0, k)),   # fused w1|w3 tile
                pl.BlockSpec((tn, dim), lambda i, k: (k, 0)),       # w2^T tile
            ],
            out_specs=pl.BlockSpec((tm, dim), lambda i, k: (i, 0)),
            scratch_shapes=[pltpu.VMEM((tm, dim), jnp.float32)],
        ),
        compiler_params=pltpu.CompilerParams(
            dimension_semantics=("parallel", "arbitrary"),
            vmem_limit_bytes=vmem_limit,
        ),
        cost_estimate=cost,
    )(x2d, w13t, w2t)
    return out.reshape(orig_shape)


if __name__ == "__main__":
    # Small, lane-dense shapes (dim multiple of 128) that still exercise both
    # the parallel token axis and the inter_dim reduction/accumulator path.
    batch, seq, dim, inter_dim = 2, 64, 256, 512
    tm, tn = 64, 128  # grid = (2 token tiles, 4 reduction steps)

    key = jax.random.PRNGKey(0)
    kx, k1, k2, k3 = jax.random.split(key, 4)

    x = jax.random.normal(kx, (batch, seq, dim), dtype=jnp.float32).astype(jnp.bfloat16)
    w1 = (jax.random.normal(k1, (inter_dim, dim), dtype=jnp.float32) * 0.02).astype(jnp.bfloat16)
    w2 = (jax.random.normal(k2, (dim, inter_dim), dtype=jnp.float32) * 0.02).astype(jnp.bfloat16)
    w3 = (jax.random.normal(k3, (inter_dim, dim), dtype=jnp.float32) * 0.02).astype(jnp.bfloat16)

    # one-time weight prep (transpose + w1/w3 fusion) outside the hot path
    w13t, w2t = prepare_mlp_weights(w1, w2, w3, tn=tn)

    fwd = jax.jit(functools.partial(mlp_forward, tm=tm, tn=tn))
    y = fwd(x, w13t, w2t)
    jax.block_until_ready(y)

    # plain-JAX reference (same bf16-in / f32-accumulate pipeline)
    x2d = x.reshape(-1, dim)
    h1 = jnp.dot(x2d, w1.T, preferred_element_type=jnp.float32)
    h3 = jnp.dot(x2d, w3.T, preferred_element_type=jnp.float32)
    g = ((h1 * jax.nn.sigmoid(h1)) * h3).astype(jnp.bfloat16)
    y_ref = (
        jnp.dot(g, w2.T, preferred_element_type=jnp.float32)
        .astype(jnp.bfloat16)
        .reshape(batch, seq, dim)
    )

    assert y.shape == (batch, seq, dim) and y.dtype == jnp.bfloat16
    assert jnp.allclose(
        y.astype(jnp.float32), y_ref.astype(jnp.float32), atol=2e-2, rtol=2e-2
    )

    # TODO(synk): the fp8 act_quant/fp8_gemm/weight_dequant branch of `linear`
    # is dead for bf16 weights (world_size==1) and is not implemented here.
    print("KERNEL_OK")
</pallas_src>

<mosaic_0001>
module attributes {stable_mosaic.version = 11 : i64} {
  func.func @_mlp_kernel(%arg0: i32, %arg1: i32, %arg2: memref<64x256xbf16, #tpu.memory_space<vmem>>, %arg3: memref<256x256xbf16, #tpu.memory_space<vmem>>, %arg4: memref<128x256xbf16, #tpu.memory_space<vmem>>, %arg5: memref<64x256xbf16, #tpu.memory_space<vmem>>, %arg6: memref<64x256xf32, #tpu.memory_space<vmem>>) attributes {dimension_semantics = [#tpu.dimension_semantics<parallel>, #tpu.dimension_semantics<arbitrary>], iteration_bounds = array<i64: 2, 4>, scalar_prefetch = 0 : i64, scratch_operands = 1 : i64, tpu.core_type = #tpu.core_type<tc>, window_params = [{transform_indices = @transform_0, window_bounds = array<i64: 64, 256>}, {transform_indices = @transform_1, window_bounds = array<i64: 256, 256>}, {transform_indices = @transform_2, window_bounds = array<i64: 128, 256>}, {transform_indices = @transform_3, window_bounds = array<i64: 64, 256>}]} {
    %c0_i32 = arith.constant 0 : i32
    %0 = arith.cmpi eq, %arg1, %c0_i32 : i32
    %1 = arith.extui %0 : i1 to i32
    %c0_i32_0 = arith.constant 0 : i32
    %2 = arith.cmpi ne, %1, %c0_i32_0 : i32
    scf.if %2 {
      %cst_13 = arith.constant 0.000000e+00 : f32
      %24 = vector.broadcast %cst_13 : f32 to vector<64x256xf32>
      %c0_14 = arith.constant 0 : index
      %c0_15 = arith.constant 0 : index
      %25 = vector.load %arg6[%c0_14, %c0_15] : memref<64x256xf32, #tpu.memory_space<vmem>>, vector<64x256xf32>
      tpu.vector_store %arg6[%c0_14, %c0_15], %24 {strides = array<i32>} : memref<64x256xf32, #tpu.memory_space<vmem>>, vector<64x256xf32>,
    } else {
    }
    %c0 = arith.constant 0 : index
    %c0_1 = arith.constant 0 : index
    %3 = vector.load %arg2[%c0, %c0_1] : memref<64x256xbf16, #tpu.memory_space<vmem>>, vector<64x256xbf16>
    %c0_2 = arith.constant 0 : index
    %c0_3 = arith.constant 0 : index
    %4 = vector.load %arg3[%c0_2, %c0_3] : memref<256x256xbf16, #tpu.memory_space<vmem>>, vector<256x256xbf16>
    %cst = arith.constant dense<0.000000e+00> : vector<64x256xf32>
    %5 = tpu.matmul %3, %4, %cst {dimension_numbers = #tpu.dot_dimension_numbers<[1], [0], [0], [1], [0, 0, 1, 1], [], []>} : vector<64x256xbf16>, vector<256x256xbf16>, vector<64x256xf32> -> vector<64x256xf32>
    %6 = vector.extract_strided_slice %5 {offsets = [0, 0], sizes = [64, 128], strides = [1, 1]} : vector<64x256xf32> to vector<64x128xf32>
    %7 = vector.extract_strided_slice %5 {offsets = [0, 128], sizes = [64, 128], strides = [1, 1]} : vector<64x256xf32> to vector<64x128xf32>
    %8 = arith.negf %6 : vector<64x128xf32>
    %9 = math.exp %8 : vector<64x128xf32>
    %cst_4 = arith.constant 1.000000e+00 : f32
    %10 = vector.broadcast %cst_4 : f32 to vector<64x128xf32>
    %11 = arith.addf %10, %9 : vector<64x128xf32>
    %12 = arith.divf %10, %11 : vector<64x128xf32>
    %13 = arith.mulf %6, %12 : vector<64x128xf32>
    %14 = arith.mulf %13, %7 : vector<64x128xf32>
    %15 = arith.truncf %14 : vector<64x128xf32> to vector<64x128xbf16>
    %c0_5 = arith.constant 0 : index
    %c0_6 = arith.constant 0 : index
    %16 = vector.load %arg6[%c0_5, %c0_6] : memref<64x256xf32, #tpu.memory_space<vmem>>, vector<64x256xf32>
    %c0_7 = arith.constant 0 : index
    %c0_8 = arith.constant 0 : index
    %17 = vector.load %arg4[%c0_7, %c0_8] : memref<128x256xbf16, #tpu.memory_space<vmem>>, vector<128x256xbf16>
    %cst_9 = arith.constant dense<0.000000e+00> : vector<64x256xf32>
    %18 = tpu.matmul %15, %17, %cst_9 {dimension_numbers = #tpu.dot_dimension_numbers<[1], [0], [0], [1], [0, 0, 1, 1], [], []>} : vector<64x128xbf16>, vector<128x256xbf16>, vector<64x256xf32> -> vector<64x256xf32>
    %19 = arith.addf %16, %18 : vector<64x256xf32>
    %c0_10 = arith.constant 0 : index
    %c0_11 = arith.constant 0 : index
    %20 = vector.load %arg6[%c0_10, %c0_11] : memref<64x256xf32, #tpu.memory_space<vmem>>, vector<64x256xf32>
    tpu.vector_store %arg6[%c0_10, %c0_11], %19 {strides = array<i32>} : memref<64x256xf32, #tpu.memory_space<vmem>>, vector<64x256xf32>,
    %c3_i32 = arith.constant 3 : i32
    %21 = arith.cmpi eq, %arg1, %c3_i32 : i32
    %22 = arith.extui %21 : i1 to i32
    %c0_i32_12 = arith.constant 0 : i32
    %23 = arith.cmpi ne, %22, %c0_i32_12 : i32
    scf.if %23 {
      %c0_13 = arith.constant 0 : index
      %c0_14 = arith.constant 0 : index
      %24 = vector.load %arg6[%c0_13, %c0_14] : memref<64x256xf32, #tpu.memory_space<vmem>>, vector<64x256xf32>
      %25 = arith.truncf %24 : vector<64x256xf32> to vector<64x256xbf16>
      %c0_15 = arith.constant 0 : index
      %c0_16 = arith.constant 0 : index
      %26 = vector.load %arg5[%c0_15, %c0_16] : memref<64x256xbf16, #tpu.memory_space<vmem>>, vector<64x256xbf16>
      tpu.vector_store %arg5[%c0_15, %c0_16], %25 {strides = array<i32>} : memref<64x256xbf16, #tpu.memory_space<vmem>>, vector<64x256xbf16>,
    } else {
    }
    return
  }
  func.func @transform_0(%arg0: i32, %arg1: i32) -> (i32, i32) {
    %c0_i32 = arith.constant 0 : i32
    %c0_i32_0 = arith.constant 0 : i32
    return %arg0, %c0_i32 : i32, i32
  }
  func.func @transform_1(%arg0: i32, %arg1: i32) -> (i32, i32) {
    %c0_i32 = arith.constant 0 : i32
    %c0_i32_0 = arith.constant 0 : i32
    return %c0_i32, %arg1 : i32, i32
  }
  func.func @transform_2(%arg0: i32, %arg1: i32) -> (i32, i32) {
    %c0_i32 = arith.constant 0 : i32
    %c0_i32_0 = arith.constant 0 : i32
    return %arg1, %c0_i32 : i32, i32
  }
  func.func @transform_3(%arg0: i32, %arg1: i32) -> (i32, i32) {
    %c0_i32 = arith.constant 0 : i32
    %c0_i32_0 = arith.constant 0 : i32
    return %arg0, %c0_i32 : i32, i32
  }
}

</mosaic_0001>

<llo_original>
// kernel: mlp_forward.1
$region0: #{mlp_forward.1}
  #allocation0 [shape = 'u32[]', space=smem, size = 0x4, offset = 0x4, fixed_abs, tag = 'smem constant byte address 0x4 - core index']
  #allocation1 [shape = 'u32[144,128]{1,0:T(1,128)}', space=vmem, size = 0x12000, scoped, tag = 'internal scratch']
  #allocation2 [shape = 'f32[64,256]{1,0:T(8,128)}', space=vmem, size = 0x10000, scoped, tag = 'scratch operand']
  %s0 = inlined_call_operand.hbm [shape: bf16[128,256], index: 0, kind: input, shape index: {}]
  %s1 = inlined_call_operand.hbm [shape: bf16[256,1024], index: 1, kind: input, shape index: {}]
  %s2 = inlined_call_operand.hbm [shape: bf16[512,256], index: 2, kind: input, shape index: {}]
  %s3 = inlined_call_operand.hbm [shape: bf16[128,256], index: 3, kind: output, shape index: {}]
  %s4 = sld [smem:[#allocation0]]
  $region65: #{mlp_forward.1} parent=0
    _
  %s6 = ssub.s32 1, %s4
  %s7 = scalar_select 0, %s6, %s4
  $region1: #{mlp_forward.1} parent=0
    #allocation3 [shape = 'u8[65536]{0}', space=vmem, size = 0x10000, scoped, tag = 'input window, operand 0']
    #allocation4 [shape = 's32[2]{0}', space=sflag, size = 0x8, scoped, tag = 'scoped memory for mlp_forward.1']
    #allocation5 [shape = 's32[2]{0}', space=sflag, size = 0x8, scoped, tag = 'scoped memory for mlp_forward.1']
    #allocation6 [shape = 'u8[262144]{0}', space=vmem, size = 0x40000, scoped, tag = 'input window, operand 1']
    #allocation7 [shape = 's32[2]{0}', space=sflag, size = 0x8, scoped, tag = 'scoped memory for mlp_forward.1']
    #allocation8 [shape = 'u8[131072]{0}', space=vmem, size = 0x20000, scoped, tag = 'input window, operand 2']
    #allocation9 [shape = 'u8[65536]{0}', space=vmem, size = 0x10000, scoped, tag = 'output window, operand 0']
    %8 = vsyncpa [#allocation4], 0
    %s9 = scalar_lea.sflag [#allocation4], 1
    %10 = vsyncpa %s9, 0
    %11 = vsyncpa [#allocation7], 0
    %s12 = scalar_lea.sflag [#allocation7], 1
    %13 = vsyncpa %s12, 0
    %14 = vsyncpa [#allocation5], 0
    %s15 = scalar_lea.sflag [#allocation5], 1
    %16 = vsyncpa %s15, 0
    loop: start=0, step=1, limit=10
    $region2: #{mlp_forward.1} parent=1 // loop_pre_header
      _
    $region3: #{mlp_forward.1} parent=1 // loop_header
      %s18 = sphi 0, %s22
      %p19 = scmp.ge.s32.totalorder %s18, 10
      %s25 = sphi 0, %s37
      %s26 = sphi 0, %s33
      %s27 = sphi 0, %s25
      %s28 = sphi 0, %s26
      %s29 = sphi 0, %s27
      %s30 = sphi 0, %s28
      %s40 = sphi 0, %s42
      %s43 = sphi 0, %s40
      %s44 = sphi 0, %s43
      %s60 = sphi 0, %s44
      %s66 = sphi 0, %s68
      %s69 = sphi 0, %s66
      %s70 = sphi 0, %s69
      %s86 = sphi 0, %s70
      %s92 = sphi 0, %s94
      %s95 = sphi 0, %s92
      %s96 = sphi 0, %s95
      %s112 = sphi 0, %s96
      %s118 = sphi 0, %s120
      %s121 = sphi 0, %s118
      %s122 = sphi 0, %s121
      %s138 = sphi 0, %s122
    $region4: #{mlp_forward.1} parent=1 // loop_header_branch
      %21 = sbr.rel (%p19) target = $region8
    $region5: #{mlp_forward.1} parent=1 // loop_body
      %s23 = ssub.s32 %s18, 1
      %s24 = ssub.s32 %s18, 2
      %s31 = sadd.s32 1, %s26
      %p32 = scmp.ge.s32.totalorder %s31, 4
      %s33 = scalar_select %p32, 0, %s31
      %s34 = sadd.s32 1, %s25
      %s35 = scalar_select %p32, %s34, %s25
      %p36 = scmp.ge.s32.totalorder %s35, 2
      %s37 = scalar_select %p36, 0, %s35
      %s38 = ssub.s32 %s25, %s37
      %p39 = scmp.eq.s32.totalorder %s38, 0
      %s41 = sadd.s32 %s40, 1
      %s42 = scalar_select %p39, %s40, %s41
      %p45 = pneg %p39
      %p46 = scmp.eq.s32.totalorder %s18, 7
      %p47 = por %p45, %p46
      %p48 = scmp.ne.s32.totalorder %s40, %s43
      %p49 = scmp.eq.s32.totalorder %s18, 0
      %p50 = por %p48, %p49
      %p51 = scmp.ne.s32.totalorder %s40, %s43
      %p52 = scmp.eq.s32.totalorder %s23, 7
      %p53 = por %p51, %p52
      %p54 = scmp.ne.s32.totalorder %s43, %s44
      %p55 = scmp.eq.s32.totalorder %s23, 0
      %p56 = por %p54, %p55
      %p57 = scmp.ne.s32.totalorder %s43, %s44
      %p58 = scmp.eq.s32.totalorder %s24, 7
      %p59 = por %p57, %p58
      %p61 = scmp.ne.s32.totalorder %s44, %s60
      %p62 = scmp.eq.s32.totalorder %s24, 0
      %p63 = por %p61, %p62
      %s64 = ssub.s32 %s26, %s33
      %p65 = scmp.eq.s32.totalorder %s64, 0
      %s67 = sadd.s32 %s66, 1
      %s68 = scalar_select %p65, %s66, %s67
      %p71 = pneg %p65
      %p72 = scmp.eq.s32.totalorder %s18, 7
      %p73 = por %p71, %p72
      %p74 = scmp.ne.s32.totalorder %s66, %s69
      %p75 = scmp.eq.s32.totalorder %s18, 0
      %p76 = por %p74, %p75
      %p77 = scmp.ne.s32.totalorder %s66, %s69
      %p78 = scmp.eq.s32.totalorder %s23, 7
      %p79 = por %p77, %p78
      %p80 = scmp.ne.s32.totalorder %s69, %s70
      %p81 = scmp.eq.s32.totalorder %s23, 0
      %p82 = por %p80, %p81
      %p83 = scmp.ne.s32.totalorder %s69, %s70
      %p84 = scmp.eq.s32.totalorder %s24, 7
      %p85 = por %p83, %p84
      %p87 = scmp.ne.s32.totalorder %s70, %s86
      %p88 = scmp.eq.s32.totalorder %s24, 0
      %p89 = por %p87, %p88
      %s90 = ssub.s32 %s26, %s33
      %p91 = scmp.eq.s32.totalorder %s90, 0
      %s93 = sadd.s32 %s92, 1
      %s94 = scalar_select %p91, %s92, %s93
      %p97 = pneg %p91
      %p98 = scmp.eq.s32.totalorder %s18, 7
      %p99 = por %p97, %p98
      %p100 = scmp.ne.s32.totalorder %s92, %s95
      %p101 = scmp.eq.s32.totalorder %s18, 0
      %p102 = por %p100, %p101
      %p103 = scmp.ne.s32.totalorder %s92, %s95
      %p104 = scmp.eq.s32.totalorder %s23, 7
      %p105 = por %p103, %p104
      %p106 = scmp.ne.s32.totalorder %s95, %s96
      %p107 = scmp.eq.s32.totalorder %s23, 0
      %p108 = por %p106, %p107
      %p109 = scmp.ne.s32.totalorder %s95, %s96
      %p110 = scmp.eq.s32.totalorder %s24, 7
      %p111 = por %p109, %p110
      %p113 = scmp.ne.s32.totalorder %s96, %s112
      %p114 = scmp.eq.s32.totalorder %s24, 0
      %p115 = por %p113, %p114
      %s116 = ssub.s32 %s25, %s37
      %p117 = scmp.eq.s32.totalorder %s116, 0
      %s119 = sadd.s32 %s118, 1
      %s120 = scalar_select %p117, %s118, %s119
      %p123 = pneg %p117
      %p124 = scmp.eq.s32.totalorder %s18, 7
      %p125 = por %p123, %p124
      %p126 = scmp.ne.s32.totalorder %s118, %s121
      %p127 = scmp.eq.s32.totalorder %s18, 0
      %p128 = por %p126, %p127
      %p129 = scmp.ne.s32.totalorder %s118, %s121
      %p130 = scmp.eq.s32.totalorder %s23, 7
      %p131 = por %p129, %p130
      %p132 = scmp.ne.s32.totalorder %s121, %s122
      %p133 = scmp.eq.s32.totalorder %s23, 0
      %p134 = por %p132, %p133
      %p135 = scmp.ne.s32.totalorder %s121, %s122
      %p136 = scmp.eq.s32.totalorder %s24, 7
      %p137 = por %p135, %p136
      %p139 = scmp.ne.s32.totalorder %s122, %s138
      %p140 = scmp.eq.s32.totalorder %s24, 0
      %p141 = por %p139, %p140
      %p142 = scmp.le.s32.totalorder 1, %s18
      %p143 = scmp.lt.s32.totalorder %s18, 9
      %p144 = pnand %p142, %p143
      %p145 = pneg %p144
      // Predicated region
      $region9: #{mlp_forward.1} parent=5 // pred_check
        _
      $region10: #{mlp_forward.1} parent=5 // pred_check_branch
        %147 = sbr.rel (%p144) target = $region12
      $region11: #{mlp_forward.1} parent=5 // pred_region
        %s148 = ssub.s32 %s18, 1
      $region12: #{mlp_forward.1} parent=5 // pred_fallthru
        _
      %p149 = scmp.lt.s32.totalorder %s18, 8
      // Predicated region
      $region13: #{mlp_forward.1} parent=5 // pred_check
        %p150 = pneg %p149
      $region14: #{mlp_forward.1} parent=5 // pred_check_branch
        %152 = sbr.rel (%p150) target = $region16
      $region15: #{mlp_forward.1} parent=5 // pred_region
        // Predicated region
        $region17: #{mlp_forward.1} parent=15 // pred_check
          %p153 = pneg %p50
        $region18: #{mlp_forward.1} parent=15 // pred_check_branch
          %155 = sbr.rel (%p153) target = $region20
        $region19: #{mlp_forward.1} parent=15 // pred_region
          %s156 = sand.u32 %s40, 1
          %s157 = scalar_lea.sflag [#allocation4], %s156
          %s158 = sand.u32 %s40, 1
          %s159 = smul.addr %s158, 64
          %s160 = scalar_lea.vmem [#allocation3], %s159
          %s161 = smul.u32 8, %s25
          %s163 = ssub.s32 1024, 1024
          %164 = vsyncadd %s157, %s163
          %s165 = smul.addr %s161, 2
          %s166 = smul.addr %s165, 64
          %s167 = scalar_lea.hbm %s0, %s166
          %s168 = sshll.u32 %s160, 4
          %s169 = int_to_ptr.vmem [resolvable:$true] %s168
          %174 = dma.hbm_to_vmem [thread:$0]  %s167, 1024, %s169, %s157, 128, 128, 8
        $region20: #{mlp_forward.1} parent=15 // pred_fallthru
          _
        // Predicated region
        $region21: #{mlp_forward.1} parent=15 // pred_check
          %p175 = pneg %p76
        $region22: #{mlp_forward.1} parent=15 // pred_check_branch
          %177 = sbr.rel (%p175) target = $region24
        $region23: #{mlp_forward.1} parent=15 // pred_region
          %s178 = sand.u32 %s18, 1
          %s179 = scalar_lea.sflag [#allocation7], %s178
          %s180 = sand.u32 %s66, 1
          %s181 = smul.addr %s180, 256
          %s182 = scalar_lea.vmem [#allocation6], %s181
          %s183 = smul.u32 2, %s26
          %s185 = ssub.s32 4096, 4096
          %186 = vsyncadd %s179, %s185
          %s187 = smul.addr %s183, 64
          %s188 = scalar_lea.hbm %s1, %s187
          %s189 = sshll.u32 %s182, 4
          %s190 = int_to_ptr.vmem [resolvable:$true] %s189
          %195 = dma.hbm_to_vmem [thread:$0]  %s188, 4096, %s190, %s179, 512, 128, 8
        $region24: #{mlp_forward.1} parent=15 // pred_fallthru
          _
        // Predicated region
        $region25: #{mlp_forward.1} parent=15 // pred_check
          %p196 = pneg %p102
        $region26: #{mlp_forward.1} parent=15 // pred_check_branch
          %198 = sbr.rel (%p196) target = $region28
        $region27: #{mlp_forward.1} parent=15 // pred_region
          %s199 = sand.u32 %s18, 1
          %s200 = scalar_lea.sflag [#allocation7], %s199
          %s201 = sand.u32 %s92, 1
          %s202 = smul.addr %s201, 128
          %s203 = scalar_lea.vmem [#allocation8], %s202
          %s204 = smul.u32 16, %s26
          %s206 = ssub.s32 2048, 2048
          %207 = vsyncadd %s200, %s206
          %s208 = smul.addr %s204, 2
          %s209 = smul.addr %s208, 64
          %s210 = scalar_lea.hbm %s2, %s209
          %s211 = sshll.u32 %s203, 4
          %s212 = int_to_ptr.vmem [resolvable:$true] %s211
          %217 = dma.hbm_to_vmem [thread:$0]  %s210, 2048, %s212, %s200, 128, 128, 8
        $region28: #{mlp_forward.1} parent=15 // pred_fallthru
          _
      $region16: #{mlp_forward.1} parent=5 // pred_fallthru
        _
      %p218 = scmp.le.s32.totalorder 1, %s18
      %p219 = scmp.lt.s32.totalorder %s18, 9
      %p220 = pnand %p218, %p219
      %p221 = pneg %p220
      // Predicated region
      $region29: #{mlp_forward.1} parent=5 // pred_check
        _
      $region30: #{mlp_forward.1} parent=5 // pred_check_branch
        %223 = sbr.rel (%p220) target = $region32
      $region31: #{mlp_forward.1} parent=5 // pred_region
        %s224 = ssub.s32 %s18, 1
        %s225 = sand.u32 %s43, 1
        %s226 = scalar_lea.sflag [#allocation4], %s225
        %s227 = sand.u32 %s43, 1
        %s228 = smul.addr %s227, 64
        %s229 = scalar_lea.vmem [#allocation3], %s228
        // Predicated region
        $region33: #{mlp_forward.1} parent=31 // pred_check
          %p230 = pneg %p56
        $region34: #{mlp_forward.1} parent=31 // pred_check_branch
          %232 = sbr.rel (%p230) target = $region36
        $region35: #{mlp_forward.1} parent=31 // pred_region
          %233 = dma.done %s226, 1024
        $region36: #{mlp_forward.1} parent=31 // pred_fallthru
          _
        %s234 = sand.u32 %s23, 1
        %s235 = scalar_lea.sflag [#allocation7], %s234
        %s236 = sand.u32 %s69, 1
        %s237 = smul.addr %s236, 256
        %s238 = scalar_lea.vmem [#allocation6], %s237
        // Predicated region
        $region37: #{mlp_forward.1} parent=31 // pred_check
          %p239 = pneg %p82
        $region38: #{mlp_forward.1} parent=31 // pred_check_branch
          %241 = sbr.rel (%p239) target = $region40
        $region39: #{mlp_forward.1} parent=31 // pred_region
          %242 = dma.done %s235, 4096
        $region40: #{mlp_forward.1} parent=31 // pred_fallthru
          _
        %s243 = sand.u32 %s23, 1
        %s244 = scalar_lea.sflag [#allocation7], %s243
        %s245 = sand.u32 %s95, 1
        %s246 = smul.addr %s245, 128
        %s247 = scalar_lea.vmem [#allocation8], %s246
        // Predicated region
        $region41: #{mlp_forward.1} parent=31 // pred_check
          %p248 = pneg %p108
        $region42: #{mlp_forward.1} parent=31 // pred_check_branch
          %250 = sbr.rel (%p248) target = $region44
        $region43: #{mlp_forward.1} parent=31 // pred_region
          %251 = dma.done %s244, 2048
        $region44: #{mlp_forward.1} parent=31 // pred_fallthru
          _
        %s252 = sand.u32 %s43, 1
        %s253 = scalar_lea.sflag [#allocation4], %s252
        %s254 = sand.u32 %s43, 1
        %s255 = smul.addr %s254, 64
        %s256 = scalar_lea.vmem [#allocation3], %s255
        %p257 = pneg %p56
        %p258 = pneg %p53
        %s259 = sand.u32 %s23, 1
        %s260 = scalar_lea.sflag [#allocation7], %s259
        %s261 = sand.u32 %s69, 1
        %s262 = smul.addr %s261, 256
        %s263 = scalar_lea.vmem [#allocation6], %s262
        %p264 = pneg %p82
        %p265 = pneg %p79
        %s266 = sand.u32 %s23, 1
        %s267 = scalar_lea.sflag [#allocation7], %s266
        %s268 = sand.u32 %s95, 1
        %s269 = smul.addr %s268, 128
        %s270 = scalar_lea.vmem [#allocation8], %s269
        %p271 = pneg %p108
        %p272 = pneg %p105
        %p273 = pneg %p134
        %p274 = pneg %p131
        %s275 = sand.u32 %s121, 1
        %s276 = scalar_lea.sflag [#allocation5], %s275
        %s277 = sand.u32 %s121, 1
        %s278 = smul.addr %s277, 64
        %s279 = scalar_lea.vmem [#allocation9], %s278
        %s280 = smul.u32 8, %s27
        %s281 = smul.u32 2, %s28
        %s282 = smul.u32 16, %s28
        %s283 = smul.u32 8, %s27
        %p285 = scmp.eq.s32.totalorder %s28, 0
        // Predicated region
        $region45: #{mlp_forward.1} parent=31 // pred_check
          %p286 = pneg %p285
        $region46: #{mlp_forward.1} parent=31 // pred_check_branch
          %288 = sbr.rel (%p286) target = $region48
        $region47: #{mlp_forward.1} parent=31 // pred_region
          %289 = vst [vmem:[#allocation2] sm:$0xff] 0.0
          %290 = vst [vmem:[#allocation2 + $0x8] sm:$0xff] 0.0
          %291 = vst [vmem:[#allocation2 + $0x10] sm:$0xff] 0.0
          %292 = vst [vmem:[#allocation2 + $0x18] sm:$0xff] 0.0
          %293 = vst [vmem:[#allocation2 + $0x20] sm:$0xff] 0.0
          %294 = vst [vmem:[#allocation2 + $0x28] sm:$0xff] 0.0
          %295 = vst [vmem:[#allocation2 + $0x30] sm:$0xff] 0.0
          %296 = vst [vmem:[#allocation2 + $0x38] sm:$0xff] 0.0
          %297 = vst [vmem:[#allocation2 + $0x40] sm:$0xff] 0.0
          %298 = vst [vmem:[#allocation2 + $0x48] sm:$0xff] 0.0
          %299 = vst [vmem:[#allocation2 + $0x50] sm:$0xff] 0.0
          %300 = vst [vmem:[#allocation2 + $0x58] sm:$0xff] 0.0
          %301 = vst [vmem:[#allocation2 + $0x60] sm:$0xff] 0.0
          %302 = vst [vmem:[#allocation2 + $0x68] sm:$0xff] 0.0
          %303 = vst [vmem:[#allocation2 + $0x70] sm:$0xff] 0.0
          %304 = vst [vmem:[#allocation2 + $0x78] sm:$0xff] 0.0
        $region48: #{mlp_forward.1} parent=31 // pred_fallthru
          _
        %v305 = vld [vmem:[%s229] sm:$0xff]
        %v306 = vld [vmem:[%s229 + $0x8] sm:$0xff]
        %v307 = vld [vmem:[%s229 + $0x10] sm:$0xff]
        %v308 = vld [vmem:[%s229 + $0x18] sm:$0xff]
        %v309 = vld [vmem:[%s229 + $0x20] sm:$0xff]
        %v310 = vld [vmem:[%s229 + $0x28] sm:$0xff]
        %v311 = vld [vmem:[%s229 + $0x30] sm:$0xff]
        %v312 = vld [vmem:[%s229 + $0x38] sm:$0xff]
        %v313 = vld [vmem:[%s238] sm:$0xff]
        %v314 = vld [vmem:[%s238 + $0x8] sm:$0xff]
        %v315 = vld [vmem:[%s238 + $0x10] sm:$0xff]
        %v316 = vld [vmem:[%s238 + $0x18] sm:$0xff]
        %v317 = vld [vmem:[%s238 + $0x20] sm:$0xff]
        %v318 = vld [vmem:[%s238 + $0x28] sm:$0xff]
        %v319 = vld [vmem:[%s238 + $0x30] sm:$0xff]
        %v320 = vld [vmem:[%s238 + $0x38] sm:$0xff]
        %v321 = vld [vmem:[%s238 + $0x40] sm:$0xff]
        %v322 = vld [vmem:[%s238 + $0x48] sm:$0xff]
        %v323 = vld [vmem:[%s238 + $0x50] sm:$0xff]
        %v324 = vld [vmem:[%s238 + $0x58] sm:$0xff]
        %v325 = vld [vmem:[%s238 + $0x60] sm:$0xff]
        %v326 = vld [vmem:[%s238 + $0x68] sm:$0xff]
        %v327 = vld [vmem:[%s238 + $0x70] sm:$0xff]
        %v328 = vld [vmem:[%s238 + $0x78] sm:$0xff]
        %v329 = vld [vmem:[%s238 + $0x80] sm:$0xff]
        %v330 = vld [vmem:[%s238 + $0x88] sm:$0xff]
        %v331 = vld [vmem:[%s238 + $0x90] sm:$0xff]
        %v332 = vld [vmem:[%s238 + $0x98] sm:$0xff]
        %v333 = vld [vmem:[%s238 + $0xa0] sm:$0xff]
        %v334 = vld [vmem:[%s238 + $0xa8] sm:$0xff]
        %v335 = vld [vmem:[%s238 + $0xb0] sm:$0xff]
        %v336 = vld [vmem:[%s238 + $0xb8] sm:$0xff]
        %v337 = vld [vmem:[%s238 + $0xc0] sm:$0xff]
        %v338 = vld [vmem:[%s238 + $0xc8] sm:$0xff]
        %v339 = vld [vmem:[%s238 + $0xd0] sm:$0xff]
        %v340 = vld [vmem:[%s238 + $0xd8] sm:$0xff]
        %v341 = vld [vmem:[%s238 + $0xe0] sm:$0xff]
        %v342 = vld [vmem:[%s238 + $0xe8] sm:$0xff]
        %v343 = vld [vmem:[%s238 + $0xf0] sm:$0xff]
        %v344 = vld [vmem:[%s238 + $0xf8] sm:$0xff]
        %v353 = vunpack.c.l.b16 %v305
        %v354 = vunpack.c.h.b16 %v305
        %v355 = vunpack.c.l.b16 %v306
        %v356 = vunpack.c.h.b16 %v306
        %v357 = vunpack.c.l.b16 %v307
        %v358 = vunpack.c.h.b16 %v307
        %v359 = vunpack.c.l.b16 %v308
        %v360 = vunpack.c.h.b16 %v308
        %v361 = vunpack.c.l.b16 %v309
        %v362 = vunpack.c.h.b16 %v309
        %v363 = vunpack.c.l.b16 %v310
        %v364 = vunpack.c.h.b16 %v310
        %v365 = vunpack.c.l.b16 %v311
        %v366 = vunpack.c.h.b16 %v311
        %v367 = vunpack.c.l.b16 %v312
        %v368 = vunpack.c.h.b16 %v312
        %v369 = vpack.c.b16 %v355, %v353
        %v370 = vpack.c.b16 %v356, %v354
        %v371 = vpack.c.b16 %v359, %v357
        %v372 = vpack.c.b16 %v360, %v358
        %v373 = vpack.c.b16 %v363, %v361
        %v374 = vpack.c.b16 %v364, %v362
        %v375 = vpack.c.b16 %v367, %v365
        %v376 = vpack.c.b16 %v368, %v366
        %v417 = vunpack.c.l.b16 %v313
        %v418 = vunpack.c.h.b16 %v313
        %v419 = vunpack.c.l.b16 %v314
        %v420 = vunpack.c.h.b16 %v314
        %v421 = vunpack.c.l.b16 %v315
        %v422 = vunpack.c.h.b16 %v315
        %v423 = vunpack.c.l.b16 %v316
        %v424 = vunpack.c.h.b16 %v316
        %v425 = vunpack.c.l.b16 %v317
        %v426 = vunpack.c.h.b16 %v317
        %v427 = vunpack.c.l.b16 %v318
        %v428 = vunpack.c.h.b16 %v318
        %v429 = vunpack.c.l.b16 %v319
        %v430 = vunpack.c.h.b16 %v319
        %v431 = vunpack.c.l.b16 %v320
        %v432 = vunpack.c.h.b16 %v320
        %v433 = vunpack.c.l.b16 %v321
        %v434 = vunpack.c.h.b16 %v321
        %v435 = vunpack.c.l.b16 %v322
        %v436 = vunpack.c.h.b16 %v322
        %v437 = vunpack.c.l.b16 %v323
        %v438 = vunpack.c.h.b16 %v323
        %v439 = vunpack.c.l.b16 %v324
        %v440 = vunpack.c.h.b16 %v324
        %v441 = vunpack.c.l.b16 %v325
        %v442 = vunpack.c.h.b16 %v325
        %v443 = vunpack.c.l.b16 %v326
        %v444 = vunpack.c.h.b16 %v326
        %v445 = vunpack.c.l.b16 %v327
        %v446 = vunpack.c.h.b16 %v327
        %v447 = vunpack.c.l.b16 %v328
        %v448 = vunpack.c.h.b16 %v328
        %v449 = vunpack.c.l.b16 %v329
        %v450 = vunpack.c.h.b16 %v329
        %v451 = vunpack.c.l.b16 %v330
        %v452 = vunpack.c.h.b16 %v330
        %v453 = vunpack.c.l.b16 %v331
        %v454 = vunpack.c.h.b16 %v331
        %v455 = vunpack.c.l.b16 %v332
        %v456 = vunpack.c.h.b16 %v332
        %v457 = vunpack.c.l.b16 %v333
        %v458 = vunpack.c.h.b16 %v333
        %v459 = vunpack.c.l.b16 %v334
        %v460 = vunpack.c.h.b16 %v334
        %v461 = vunpack.c.l.b16 %v335
        %v462 = vunpack.c.h.b16 %v335
        %v463 = vunpack.c.l.b16 %v336
        %v464 = vunpack.c.h.b16 %v336
        %v465 = vunpack.c.l.b16 %v337
        %v466 = vunpack.c.h.b16 %v337
        %v467 = vunpack.c.l.b16 %v338
        %v468 = vunpack.c.h.b16 %v338
        %v469 = vunpack.c.l.b16 %v339
        %v470 = vunpack.c.h.b16 %v339
        %v471 = vunpack.c.l.b16 %v340
        %v472 = vunpack.c.h.b16 %v340
        %v473 = vunpack.c.l.b16 %v341
        %v474 = vunpack.c.h.b16 %v341
        %v475 = vunpack.c.l.b16 %v342
        %v476 = vunpack.c.h.b16 %v342
        %v477 = vunpack.c.l.b16 %v343
        %v478 = vunpack.c.h.b16 %v343
        %v479 = vunpack.c.l.b16 %v344
        %v480 = vunpack.c.h.b16 %v344
        %v481 = vpack.c.b16 %v419, %v417
        %v482 = vpack.c.b16 %v420, %v418
        %v483 = vpack.c.b16 %v423, %v421
        %v484 = vpack.c.b16 %v424, %v422
        %v485 = vpack.c.b16 %v427, %v425
        %v486 = vpack.c.b16 %v428, %v426
        %v487 = vpack.c.b16 %v431, %v429
        %v488 = vpack.c.b16 %v432, %v430
        %v489 = vpack.c.b16 %v435, %v433
        %v490 = vpack.c.b16 %v436, %v434
        %v491 = vpack.c.b16 %v439, %v437
        %v492 = vpack.c.b16 %v440, %v438
        %v493 = vpack.c.b16 %v443, %v441
        %v494 = vpack.c.b16 %v444, %v442
        %v495 = vpack.c.b16 %v447, %v445
        %v496 = vpack.c.b16 %v448, %v446
        %v497 = vpack.c.b16 %v451, %v449
        %v498 = vpack.c.b16 %v452, %v450
        %v499 = vpack.c.b16 %v455, %v453
        %v500 = vpack.c.b16 %v456, %v454
        %v501 = vpack.c.b16 %v459, %v457
        %v502 = vpack.c.b16 %v460, %v458
        %v503 = vpack.c.b16 %v463, %v461
        %v504 = vpack.c.b16 %v464, %v462
        %v505 = vpack.c.b16 %v467, %v465
        %v506 = vpack.c.b16 %v468, %v466
        %v507 = vpack.c.b16 %v471, %v469
        %v508 = vpack.c.b16 %v472, %v470
        %v509 = vpack.c.b16 %v475, %v473
        %v510 = vpack.c.b16 %v476, %v474
        %v511 = vpack.c.b16 %v479, %v477
        %v512 = vpack.c.b16 %v480, %v478
        %545 = vmatprep.subr.bf16.mxu0 %v482
        %546 = vmatpush1.bf16.msra.mxu0 %v481
        %547 = vmatprep.subr.bf16.mxu0 %v484
        %548 = vmatpush1.bf16.msra.mxu0 %v483
        %549 = vmatprep.subr.bf16.mxu0 %v486
        %550 = vmatpush1.bf16.msra.mxu0 %v485
        %551 = vmatprep.subr.bf16.mxu0 %v488
        %552 = vmatpush1.bf16.msra.mxu0 %v487
        %553 = vmatprep.subr.bf16.mxu0 %v490
        %554 = vmatpush1.bf16.msra.mxu0 %v489
        %555 = vmatprep.subr.bf16.mxu0 %v492
        %556 = vmatpush1.bf16.msra.mxu0 %v491
        %557 = vmatprep.subr.bf16.mxu0 %v494
        %558 = vmatpush1.bf16.msra.mxu0 %v493
        %559 = vmatprep.subr.bf16.mxu0 %v496
        %560 = vmatpush1.bf16.msra.mxu0 %v495
        %561 = vmatprep.subr.bf16.mxu0 %v498
        %562 = vmatpush1.bf16.msra.mxu0 %v497
        %563 = vmatprep.subr.bf16.mxu0 %v500
        %564 = vmatpush1.bf16.msra.mxu0 %v499
        %565 = vmatprep.subr.bf16.mxu0 %v502
        %566 = vmatpush1.bf16.msra.mxu0 %v501
        %567 = vmatprep.subr.bf16.mxu0 %v504
        %568 = vmatpush1.bf16.msra.mxu0 %v503
        %569 = vmatprep.subr.bf16.mxu0 %v506
        %570 = vmatpush1.bf16.msra.mxu0 %v505
        %571 = vmatprep.subr.bf16.mxu0 %v508
        %572 = vmatpush1.bf16.msra.mxu0 %v507
        %573 = vmatprep.subr.bf16.mxu0 %v510
        %574 = vmatpush1.bf16.msra.mxu0 %v509
        %575 = vmatprep.subr.bf16.mxu0 %v512
        %576 = vmatpush1.bf16.msra.mxu0 %v511
        %577 = vmatprep.mubr.bf16.mxu0 %v370
        %578 = vmatmul.mubr.bf16.gmra.mrb[0].mxu0 %v369
        %v579 = vpop.f32.mrb[0].mxu0
        %v580 = vadd.f32 0.0, %v579
        %v581 = vpop.f32.mrb[0].mxu0
        %v582 = vadd.f32 0.0, %v581
        %v583 = vpop.f32.mrb[0].mxu0
        %v584 = vadd.f32 0.0, %v583
        %v585 = vpop.f32.mrb[0].mxu0
        %v586 = vadd.f32 0.0, %v585
        %587 = vmatprep.mubr.bf16.mxu0 %v372
        %588 = vmatmul.mubr.bf16.gmra.mrb[0].mxu0 %v371
        %v589 = vpop.f32.mrb[0].mxu0
        %v590 = vadd.f32 0.0, %v589
        %v591 = vpop.f32.mrb[0].mxu0
        %v592 = vadd.f32 0.0, %v591
        %v593 = vpop.f32.mrb[0].mxu0
        %v594 = vadd.f32 0.0, %v593
        %v595 = vpop.f32.mrb[0].mxu0
        %v596 = vadd.f32 0.0, %v595
        %597 = vmatprep.mubr.bf16.mxu0 %v374
        %598 = vmatmul.mubr.bf16.gmra.mrb[0].mxu0 %v373
        %v599 = vpop.f32.mrb[0].mxu0
        %v600 = vadd.f32 0.0, %v599
        %v601 = vpop.f32.mrb[0].mxu0
        %v602 = vadd.f32 0.0, %v601
        %v603 = vpop.f32.mrb[0].mxu0
        %v604 = vadd.f32 0.0, %v603
        %v605 = vpop.f32.mrb[0].mxu0
        %v606 = vadd.f32 0.0, %v605
        %607 = vmatprep.mubr.bf16.mxu0 %v376
        %608 = vmatmul.mubr.bf16.gmra.mrb[0].mxu0 %v375
        %v609 = vpop.f32.mrb[0].mxu0
        %v610 = vadd.f32 0.0, %v609
        %v611 = vpop.f32.mrb[0].mxu0
        %v612 = vadd.f32 0.0, %v611
        %v613 = vpop.f32.mrb[0].mxu0
        %v614 = vadd.f32 0.0, %v613
        %v615 = vpop.f32.mrb[0].mxu0
        %v616 = vadd.f32 0.0, %v615
        %617 = vdwg.mxu0
        %v618 = vxor.u32 %v580, 2147483648
        %v619 = vxor.u32 %v584, 2147483648
        %v620 = vxor.u32 %v590, 2147483648
        %v621 = vxor.u32 %v594, 2147483648
        %v622 = vxor.u32 %v600, 2147483648
        %v623 = vxor.u32 %v604, 2147483648
        %v624 = vxor.u32 %v610, 2147483648
        %v625 = vxor.u32 %v614, 2147483648
        %v626 = vmul.f32 %v618, 1.442695
        %v627 = vpow.pop %v626
        %v628 = vmul.f32 %v619, 1.442695
        %v629 = vpow.pop %v628
        %v630 = vmul.f32 %v620, 1.442695
        %v631 = vpow.pop %v630
        %v632 = vmul.f32 %v621, 1.442695
        %v633 = vpow.pop %v632
        %v634 = vmul.f32 %v622, 1.442695
        %v635 = vpow.pop %v634
        %v636 = vmul.f32 %v623, 1.442695
        %v637 = vpow.pop %v636
        %v638 = vmul.f32 %v624, 1.442695
        %v639 = vpow.pop %v638
        %v640 = vmul.f32 %v625, 1.442695
        %v641 = vpow.pop %v640
        %v642 = vadd.f32 %v627, 1.0
        %v643 = vadd.f32 %v629, 1.0
        %v644 = vadd.f32 %v631, 1.0
        %v645 = vadd.f32 %v633, 1.0
        %v646 = vadd.f32 %v635, 1.0
        %v647 = vadd.f32 %v637, 1.0
        %v648 = vadd.f32 %v639, 1.0
        %v649 = vadd.f32 %v641, 1.0
        %v650 = vrcp.pop %v642
        %v651 = vmul.f32 1.0, %v650
        %v652 = vrcp.pop %v643
        %v653 = vmul.f32 1.0, %v652
        %v654 = vrcp.pop %v644
        %v655 = vmul.f32 1.0, %v654
        %v656 = vrcp.pop %v645
        %v657 = vmul.f32 1.0, %v656
        %v658 = vrcp.pop %v646
        %v659 = vmul.f32 1.0, %v658
        %v660 = vrcp.pop %v647
        %v661 = vmul.f32 1.0, %v660
        %v662 = vrcp.pop %v648
        %v663 = vmul.f32 1.0, %v662
        %v664 = vrcp.pop %v649
        %v665 = vmul.f32 1.0, %v664
        %v666 = vmul.f32 %v580, %v651
        %v667 = vmul.f32 %v584, %v653
        %v668 = vmul.f32 %v590, %v655
        %v669 = vmul.f32 %v594, %v657
        %v670 = vmul.f32 %v600, %v659
        %v671 = vmul.f32 %v604, %v661
        %v672 = vmul.f32 %v610, %v663
        %v673 = vmul.f32 %v614, %v665
        %v674 = vmul.f32 %v666, %v582
        %v675 = vmul.f32 %v667, %v586
        %v676 = vmul.f32 %v668, %v592
        %v677 = vmul.f32 %v669, %v596
        %v678 = vmul.f32 %v670, %v602
        %v679 = vmul.f32 %v671, %v606
        %v680 = vmul.f32 %v672, %v612
        %v681 = vmul.f32 %v673, %v616
        %v682 = vpack.c.bf16 %v675, %v674
        %v683 = vpack.c.bf16 %v677, %v676
        %v684 = vpack.c.bf16 %v679, %v678
        %v685 = vpack.c.bf16 %v681, %v680
        %v686 = vld [vmem:[#allocation2] sm:$0xff]
        %v687 = vld [vmem:[#allocation2 + $0x8] sm:$0xff]
        %v688 = vld [vmem:[#allocation2 + $0x10] sm:$0xff]
        %v689 = vld [vmem:[#allocation2 + $0x18] sm:$0xff]
        %v690 = vld [vmem:[#allocation2 + $0x20] sm:$0xff]
        %v691 = vld [vmem:[#allocation2 + $0x28] sm:$0xff]
        %v692 = vld [vmem:[#allocation2 + $0x30] sm:$0xff]
        %v693 = vld [vmem:[#allocation2 + $0x38] sm:$0xff]
        %v694 = vld [vmem:[#allocation2 + $0x40] sm:$0xff]
        %v695 = vld [vmem:[#allocation2 + $0x48] sm:$0xff]
        %v696 = vld [vmem:[#allocation2 + $0x50] sm:$0xff]
        %v697 = vld [vmem:[#allocation2 + $0x58] sm:$0xff]
        %v698 = vld [vmem:[#allocation2 + $0x60] sm:$0xff]
        %v699 = vld [vmem:[#allocation2 + $0x68] sm:$0xff]
        %v700 = vld [vmem:[#allocation2 + $0x70] sm:$0xff]
        %v701 = vld [vmem:[#allocation2 + $0x78] sm:$0xff]
        %v702 = vld [vmem:[%s247] sm:$0xff]
        %v703 = vld [vmem:[%s247 + $0x8] sm:$0xff]
        %v704 = vld [vmem:[%s247 + $0x10] sm:$0xff]
        %v705 = vld [vmem:[%s247 + $0x18] sm:$0xff]
        %v706 = vld [vmem:[%s247 + $0x20] sm:$0xff]
        %v707 = vld [vmem:[%s247 + $0x28] sm:$0xff]
        %v708 = vld [vmem:[%s247 + $0x30] sm:$0xff]
        %v709 = vld [vmem:[%s247 + $0x38] sm:$0xff]
        %v710 = vld [vmem:[%s247 + $0x40] sm:$0xff]
        %v711 = vld [vmem:[%s247 + $0x48] sm:$0xff]
        %v712 = vld [vmem:[%s247 + $0x50] sm:$0xff]
        %v713 = vld [vmem:[%s247 + $0x58] sm:$0xff]
        %v714 = vld [vmem:[%s247 + $0x60] sm:$0xff]
        %v715 = vld [vmem:[%s247 + $0x68] sm:$0xff]
        %v716 = vld [vmem:[%s247 + $0x70] sm:$0xff]
        %v717 = vld [vmem:[%s247 + $0x78] sm:$0xff]
        %v734 = vunpack.c.l.b16 %v702
        %v735 = vunpack.c.h.b16 %v702
        %v736 = vunpack.c.l.b16 %v703
        %v737 = vunpack.c.h.b16 %v703
        %v738 = vunpack.c.l.b16 %v704
        %v739 = vunpack.c.h.b16 %v704
        %v740 = vunpack.c.l.b16 %v705
        %v741 = vunpack.c.h.b16 %v705
        %v742 = vunpack.c.l.b16 %v706
        %v743 = vunpack.c.h.b16 %v706
        %v744 = vunpack.c.l.b16 %v707
        %v745 = vunpack.c.h.b16 %v707
        %v746 = vunpack.c.l.b16 %v708
        %v747 = vunpack.c.h.b16 %v708
        %v748 = vunpack.c.l.b16 %v709
        %v749 = vunpack.c.h.b16 %v709
        %v750 = vunpack.c.l.b16 %v710
        %v751 = vunpack.c.h.b16 %v710
        %v752 = vunpack.c.l.b16 %v711
        %v753 = vunpack.c.h.b16 %v711
        %v754 = vunpack.c.l.b16 %v712
        %v755 = vunpack.c.h.b16 %v712
        %v756 = vunpack.c.l.b16 %v713
        %v757 = vunpack.c.h.b16 %v713
        %v758 = vunpack.c.l.b16 %v714
        %v759 = vunpack.c.h.b16 %v714
        %v760 = vunpack.c.l.b16 %v715
        %v761 = vunpack.c.h.b16 %v715
        %v762 = vunpack.c.l.b16 %v716
        %v763 = vunpack.c.h.b16 %v716
        %v764 = vunpack.c.l.b16 %v717
        %v765 = vunpack.c.h.b16 %v717
        %v766 = vpack.c.b16 %v736, %v734
        %v767 = vpack.c.b16 %v737, %v735
        %v768 = vpack.c.b16 %v740, %v738
        %v769 = vpack.c.b16 %v741, %v739
        %v770 = vpack.c.b16 %v744, %v742
        %v771 = vpack.c.b16 %v745, %v743
        %v772 = vpack.c.b16 %v748, %v746
        %v773 = vpack.c.b16 %v749, %v747
        %v774 = vpack.c.b16 %v752, %v750
        %v775 = vpack.c.b16 %v753, %v751
        %v776 = vpack.c.b16 %v756, %v754
        %v777 = vpack.c.b16 %v757, %v755
        %v778 = vpack.c.b16 %v760, %v758
        %v779 = vpack.c.b16 %v761, %v759
        %v780 = vpack.c.b16 %v764, %v762
        %v781 = vpack.c.b16 %v765, %v763
        %798 = vmatprep.subr.bf16.mxu0 %v767
        %799 = vmatpush1.bf16.msra.mxu0 %v766
        %800 = vmatprep.subr.bf16.mxu0 %v769
        %801 = vmatpush1.bf16.msra.mxu0 %v768
        %802 = vmatprep.subr.bf16.mxu0 %v771
        %803 = vmatpush1.bf16.msra.mxu0 %v770
        %804 = vmatprep.subr.bf16.mxu0 %v773
        %805 = vmatpush1.bf16.msra.mxu0 %v772
        %806 = vmatprep.subr.bf16.mxu0 %v775
        %807 = vmatpush1.bf16.msra.mxu0 %v774
        %808 = vmatprep.subr.bf16.mxu0 %v777
        %809 = vmatpush1.bf16.msra.mxu0 %v776
        %810 = vmatprep.subr.bf16.mxu0 %v779
        %811 = vmatpush1.bf16.msra.mxu0 %v778
        %812 = vmatprep.subr.bf16.mxu0 %v781
        %813 = vmatpush1.bf16.msra.mxu0 %v780
        %814 = vmatprep.subr.bf16.mxu0 0
        %815 = vmatpush1.bf16.msra.mxu0 0
        %816 = vmatprep.subr.bf16.mxu0 0
        %817 = vmatpush1.bf16.msra.mxu0 0
        %818 = vmatprep.subr.bf16.mxu0 0
        %819 = vmatpush1.bf16.msra.mxu0 0
        %820 = vmatprep.subr.bf16.mxu0 0
        %821 = vmatpush1.bf16.msra.mxu0 0
        %822 = vmatprep.subr.bf16.mxu0 0
        %823 = vmatpush1.bf16.msra.mxu0 0
        %824 = vmatprep.subr.bf16.mxu0 0
        %825 = vmatpush1.bf16.msra.mxu0 0
        %826 = vmatprep.subr.bf16.mxu0 0
        %827 = vmatpush1.bf16.msra.mxu0 0
        %828 = vmatprep.subr.bf16.mxu0 0
        %829 = vmatpush1.bf16.msra.mxu0 0
        %830 = vmatprep.mubr.bf16.mxu0 0
        %831 = vmatmul.mubr.bf16.gmra.mrb[0].mxu0 %v682
        %v832 = vpop.f32.mrb[0].mxu0
        %v833 = vadd.f32 0.0, %v832
        %v834 = vpop.f32.mrb[0].mxu0
        %v835 = vadd.f32 0.0, %v834
        %v836 = vpop.f32.mrb[0].mxu0
        %v837 = vadd.f32 0.0, %v836
        %v838 = vpop.f32.mrb[0].mxu0
        %v839 = vadd.f32 0.0, %v838
        %840 = vmatprep.mubr.bf16.mxu0 0
        %841 = vmatmul.mubr.bf16.gmra.mrb[0].mxu0 %v683
        %v842 = vpop.f32.mrb[0].mxu0
        %v843 = vadd.f32 0.0, %v842
        %v844 = vpop.f32.mrb[0].mxu0
        %v845 = vadd.f32 0.0, %v844
        %v846 = vpop.f32.mrb[0].mxu0
        %v847 = vadd.f32 0.0, %v846
        %v848 = vpop.f32.mrb[0].mxu0
        %v849 = vadd.f32 0.0, %v848
        %850 = vmatprep.mubr.bf16.mxu0 0
        %851 = vmatmul.mubr.bf16.gmra.mrb[0].mxu0 %v684
        %v852 = vpop.f32.mrb[0].mxu0
        %v853 = vadd.f32 0.0, %v852
        %v854 = vpop.f32.mrb[0].mxu0
        %v855 = vadd.f32 0.0, %v854
        %v856 = vpop.f32.mrb[0].mxu0
        %v857 = vadd.f32 0.0, %v856
        %v858 = vpop.f32.mrb[0].mxu0
        %v859 = vadd.f32 0.0, %v858
        %860 = vmatprep.mubr.bf16.mxu0 0
        %861 = vmatmul.mubr.bf16.gmra.mrb[0].mxu0 %v685
        %v862 = vpop.f32.mrb[0].mxu0
        %v863 = vadd.f32 0.0, %v862
        %v864 = vpop.f32.mrb[0].mxu0
        %v865 = vadd.f32 0.0, %v864
        %v866 = vpop.f32.mrb[0].mxu0
        %v867 = vadd.f32 0.0, %v866
        %v868 = vpop.f32.mrb[0].mxu0
        %v869 = vadd.f32 0.0, %v868
        %870 = vdwg.mxu0
        %v871 = vadd.f32 %v686, %v833
        %v872 = vadd.f32 %v687, %v835
        %v873 = vadd.f32 %v688, %v837
        %v874 = vadd.f32 %v689, %v839
        %v875 = vadd.f32 %v690, %v843
        %v876 = vadd.f32 %v691, %v845
        %v877 = vadd.f32 %v692, %v847
        %v878 = vadd.f32 %v693, %v849
        %v879 = vadd.f32 %v694, %v853
        %v880 = vadd.f32 %v695, %v855
        %v881 = vadd.f32 %v696, %v857
        %v882 = vadd.f32 %v697, %v859
        %v883 = vadd.f32 %v698, %v863
        %v884 = vadd.f32 %v699, %v865
        %v885 = vadd.f32 %v700, %v867
        %v886 = vadd.f32 %v701, %v869
        %887 = vst [vmem:[#allocation2] sm:$0xff] %v871
        %888 = vst [vmem:[#allocation2 + $0x8] sm:$0xff] %v872
        %889 = vst [vmem:[#allocation2 + $0x10] sm:$0xff] %v873
        %890 = vst [vmem:[#allocation2 + $0x18] sm:$0xff] %v874
        %891 = vst [vmem:[#allocation2 + $0x20] sm:$0xff] %v875
        %892 = vst [vmem:[#allocation2 + $0x28] sm:$0xff] %v876
        %893 = vst [vmem:[#allocation2 + $0x30] sm:$0xff] %v877
        %894 = vst [vmem:[#allocation2 + $0x38] sm:$0xff] %v878
        %895 = vst [vmem:[#allocation2 + $0x40] sm:$0xff] %v879
        %896 = vst [vmem:[#allocation2 + $0x48] sm:$0xff] %v880
        %897 = vst [vmem:[#allocation2 + $0x50] sm:$0xff] %v881
        %898 = vst [vmem:[#allocation2 + $0x58] sm:$0xff] %v882
        %899 = vst [vmem:[#allocation2 + $0x60] sm:$0xff] %v883
        %900 = vst [vmem:[#allocation2 + $0x68] sm:$0xff] %v884
        %901 = vst [vmem:[#allocation2 + $0x70] sm:$0xff] %v885
        %902 = vst [vmem:[#allocation2 + $0x78] sm:$0xff] %v886
        %p903 = scmp.eq.s32.totalorder %s28, 3
        // Predicated region
        $region49: #{mlp_forward.1} parent=31 // pred_check
          %p904 = pneg %p903
        $region50: #{mlp_forward.1} parent=31 // pred_check_branch
          %906 = sbr.rel (%p904) target = $region52
        $region51: #{mlp_forward.1} parent=31 // pred_region
          %v907 = vld [vmem:[#allocation2] sm:$0xff]
          %v908 = vld [vmem:[#allocation2 + $0x8] sm:$0xff]
          %v909 = vld [vmem:[#allocation2 + $0x10] sm:$0xff]
          %v910 = vld [vmem:[#allocation2 + $0x18] sm:$0xff]
          %v911 = vld [vmem:[#allocation2 + $0x20] sm:$0xff]
          %v912 = vld [vmem:[#allocation2 + $0x28] sm:$0xff]
          %v913 = vld [vmem:[#allocation2 + $0x30] sm:$0xff]
          %v914 = vld [vmem:[#allocation2 + $0x38] sm:$0xff]
          %v915 = vld [vmem:[#allocation2 + $0x40] sm:$0xff]
          %v916 = vld [vmem:[#allocation2 + $0x48] sm:$0xff]
          %v917 = vld [vmem:[#allocation2 + $0x50] sm:$0xff]
          %v918 = vld [vmem:[#allocation2 + $0x58] sm:$0xff]
          %v919 = vld [vmem:[#allocation2 + $0x60] sm:$0xff]
          %v920 = vld [vmem:[#allocation2 + $0x68] sm:$0xff]
          %v921 = vld [vmem:[#allocation2 + $0x70] sm:$0xff]
          %v922 = vld [vmem:[#allocation2 + $0x78] sm:$0xff]
          %v923 = vpack.c.bf16 %v909, %v907
          %v924 = vpack.c.bf16 %v910, %v908
          %v925 = vpack.c.bf16 %v913, %v911
          %v926 = vpack.c.bf16 %v914, %v912
          %v927 = vpack.c.bf16 %v917, %v915
          %v928 = vpack.c.bf16 %v918, %v916
          %v929 = vpack.c.bf16 %v921, %v919
          %v930 = vpack.c.bf16 %v922, %v920
          %v939 = vunpack.c.l.b16 %v923
          %v940 = vunpack.c.l.b16 %v924
          %v941 = vunpack.c.h.b16 %v923
          %v942 = vunpack.c.h.b16 %v924
          %v943 = vunpack.c.l.b16 %v925
          %v944 = vunpack.c.l.b16 %v926
          %v945 = vunpack.c.h.b16 %v925
          %v946 = vunpack.c.h.b16 %v926
          %v947 = vunpack.c.l.b16 %v927
          %v948 = vunpack.c.l.b16 %v928
          %v949 = vunpack.c.h.b16 %v927
          %v950 = vunpack.c.h.b16 %v928
          %v951 = vunpack.c.l.b16 %v929
          %v952 = vunpack.c.l.b16 %v930
          %v953 = vunpack.c.h.b16 %v929
          %v954 = vunpack.c.h.b16 %v930
          %v955 = vpack.c.b16 %v940, %v939
          %v956 = vpack.c.b16 %v942, %v941
          %v957 = vpack.c.b16 %v944, %v943
          %v958 = vpack.c.b16 %v946, %v945
          %v959 = vpack.c.b16 %v948, %v947
          %v960 = vpack.c.b16 %v950, %v949
          %v961 = vpack.c.b16 %v952, %v951
          %v962 = vpack.c.b16 %v954, %v953
          %971 = vst [vmem:[%s279] sm:$0xff] %v955
          %972 = vst [vmem:[%s279 + $0x8] sm:$0xff] %v956
          %973 = vst [vmem:[%s279 + $0x10] sm:$0xff] %v957
          %974 = vst [vmem:[%s279 + $0x18] sm:$0xff] %v958
          %975 = vst [vmem:[%s279 + $0x20] sm:$0xff] %v959
          %976 = vst [vmem:[%s279 + $0x28] sm:$0xff] %v960
          %977 = vst [vmem:[%s279 + $0x30] sm:$0xff] %v961
          %978 = vst [vmem:[%s279 + $0x38] sm:$0xff] %v962
        $region52: #{mlp_forward.1} parent=31 // pred_fallthru
          _
        %s979 = sand.u32 %s121, 1
        %s980 = scalar_lea.sflag [#allocation5], %s979
        %s981 = sand.u32 %s121, 1
        %s982 = smul.addr %s981, 64
        %s983 = scalar_lea.vmem [#allocation9], %s982
        // Predicated region
        $region53: #{mlp_forward.1} parent=31 // pred_check
          %p984 = pneg %p131
        $region54: #{mlp_forward.1} parent=31 // pred_check_branch
          %986 = sbr.rel (%p984) target = $region56
        $region55: #{mlp_forward.1} parent=31 // pred_region
          %s987 = smul.u32 8, %s27
          %s989 = ssub.s32 1024, 1024
          %990 = vsyncadd %s980, %s989
          %s991 = smul.addr %s987, 2
          %s992 = smul.addr %s991, 64
          %s993 = scalar_lea.hbm %s3, %s992
          %s994 = sshll.u32 %s983, 4
          %s995 = int_to_ptr.vmem [resolvable:$true] %s994
          %1000 = dma.vmem_to_hbm [thread:$0]  %s995, 1024, %s993, %s980, 128, 128, 8
        $region56: #{mlp_forward.1} parent=31 // pred_fallthru
          _
      $region32: #{mlp_forward.1} parent=5 // pred_fallthru
        _
      %p1001 = scmp.le.s32.totalorder 2, %s18
      // Predicated region
      $region57: #{mlp_forward.1} parent=5 // pred_check
        %p1002 = pneg %p1001
      $region58: #{mlp_forward.1} parent=5 // pred_check_branch
        %1004 = sbr.rel (%p1002) target = $region60
      $region59: #{mlp_forward.1} parent=5 // pred_region
        %s1005 = ssub.s32 %s18, 2
        // Predicated region
        $region61: #{mlp_forward.1} parent=59 // pred_check
          %p1006 = pneg %p137
        $region62: #{mlp_forward.1} parent=59 // pred_check_branch
          %1008 = sbr.rel (%p1006) target = $region64
        $region63: #{mlp_forward.1} parent=59 // pred_region
          %s1009 = sand.u32 %s122, 1
          %s1010 = scalar_lea.sflag [#allocation5], %s1009
          %s1011 = sand.u32 %s122, 1
          %s1012 = smul.addr %s1011, 64
          %s1013 = scalar_lea.vmem [#allocation9], %s1012
          %1014 = dma.done %s1010, 1024
        $region64: #{mlp_forward.1} parent=59 // pred_fallthru
          _
      $region60: #{mlp_forward.1} parent=5 // pred_fallthru
        _
    $region6: #{mlp_forward.1} parent=1 // loop_footer
      %s22 = sadd.s32 1, %s18
    $region7: #{mlp_forward.1} parent=1 // loop_footer_branch
      %17 = sbr.rel target = $region3
    $region8: #{mlp_forward.1} parent=1 // loop_exit
      _
    %1015 = vsyncpa [#allocation4], 1
    %s1016 = scalar_lea.sflag [#allocation4], 1
    %1017 = vsyncpa %s1016, 1
    %1018 = vsyncpa [#allocation7], 1
    %s1019 = scalar_lea.sflag [#allocation7], 1
    %1020 = vsyncpa %s1019, 1
    %1021 = vsyncpa [#allocation5], 1
    %s1022 = scalar_lea.sflag [#allocation5], 1
    %1023 = vsyncpa %s1022, 1

</llo_original>
